<compile_context>
chip_gen: v6e
topology: v6e:2x2x1
jax: 0.10.0
libtpu: 0.0.40
codegen_flags: <defaults>
</compile_context>

<pallas_src>
import functools

import jax
import jax.numpy as jnp
from jax.experimental import pallas as pl
from jax.experimental.pallas import tpu as pltpu


# ---------------------------------------------------------------------------
# helpers
# ---------------------------------------------------------------------------
_LANE = 128
_SUBLANE = 8


def _round_up(x: int, m: int) -> int:
    return (x + m - 1) // m * m


def _pad_to(arr, shape):
    pads = [(0, t - s) for s, t in zip(arr.shape, shape)]
    if all(p == (0, 0) for p in pads):
        return arr
    return jnp.pad(arr, pads)


# ---------------------------------------------------------------------------
# Path 1: fully-fused multi-layer kernel (small graphs: everything in VMEM)
# ---------------------------------------------------------------------------
def _gcn_fused_kernel(*refs, n_layers: int):
    # refs = (A, X, W_0, b_0, ..., W_{L-1}, b_{L-1}, out)
    a_ref, x_ref = refs[0], refs[1]
    o_ref = refs[-1]
    wb_refs = refs[2:-1]

    a = a_ref[...]          # matmul dtype (host-cast, padded rows/cols are zero)
    h = x_ref[...]          # matmul dtype, lane-padded with zeros
    for l in range(n_layers):            # static unrolled layer loop, no HBM traffic
        w = wb_refs[2 * l][...]           # (fi_p, fo_p) matmul dtype, zero-padded
        b = wb_refs[2 * l + 1][...]       # (1, fo_p)    f32, zero-padded
        xw = jnp.dot(h, w, preferred_element_type=jnp.float32)
        y = jnp.dot(a, xw.astype(w.dtype), preferred_element_type=jnp.float32)
        y = y + b
        if l < n_layers - 1:
            y = jnp.maximum(y, 0.0)       # ReLU between layers only; dropout(eval)=id
            h = y.astype(w.dtype)
        else:
            h = y
    # NOTE: padded rows pick up the bias (harmless: A's padded cols are zero and the
    # wrapper slices back to [:N, :n_classes]); do not read padded rows in-kernel.
    o_ref[...] = h.astype(o_ref.dtype)


def gcn_forward_fused(params, X, A, *, matmul_dtype=jnp.bfloat16):
    """All GCN layers in one pallas_call; every operand resident in VMEM.

    Per-layer lane-dense padding (each W padded to its own rounded shape), host-side
    casting to `matmul_dtype` (bf16 default -> ~2-4x MXU throughput on v6e/v7x, f32
    accumulation retained).
    """
    N = X.shape[0]
    n_layers = len(params)
    n_classes = params[-1][0].shape[1]
    N_pad = _round_up(N, _SUBLANE)

    dims = [X.shape[1]] + [w.shape[1] for w, _ in params]
    dims_p = [_round_up(d, _LANE) for d in dims]          # per-layer padded widths

    A_p = _pad_to(A, (N_pad, N_pad)).astype(matmul_dtype)
    X_p = _pad_to(X, (N_pad, dims_p[0])).astype(matmul_dtype)

    operands = [A_p, X_p]
    flops = 0
    for l, (W, b) in enumerate(params):
        fi_p, fo_p = dims_p[l], dims_p[l + 1]
        operands.append(_pad_to(W, (fi_p, fo_p)).astype(matmul_dtype))
        operands.append(_pad_to(b, (1, fo_p)).astype(jnp.float32))
        flops += 2 * N_pad * fi_p * fo_p + 2 * N_pad * N_pad * fo_p
    bytes_accessed = int(sum(o.size * o.dtype.itemsize for o in operands)
                         + N_pad * dims_p[-1] * 4)

    vmem_spec = pl.BlockSpec(memory_space=pltpu.MemorySpace.VMEM)
    out_p = pl.pallas_call(
        functools.partial(_gcn_fused_kernel, n_layers=n_layers),
        out_shape=jax.ShapeDtypeStruct((N_pad, dims_p[-1]), X.dtype),
        in_specs=[vmem_spec] * len(operands),
        out_specs=vmem_spec,
        cost_estimate=pl.CostEstimate(flops=flops, transcendentals=0,
                                      bytes_accessed=bytes_accessed),
    )(*operands)
    return out_p[:N, :n_classes]


# ---------------------------------------------------------------------------
# Path 2: tiled per-layer kernels (large graphs: stream A tiles from HBM)
# ---------------------------------------------------------------------------
def _xw_kernel(x_ref, w_ref, o_ref):
    # Stage 1: per-layer feature transform, computed exactly once per row tile.
    o_ref[...] = jnp.dot(x_ref[...], w_ref[...],
                         preferred_element_type=jnp.float32).astype(o_ref.dtype)


def _agg_kernel(a_ref, xw_ref, b_ref, o_ref, acc_ref, *, apply_relu: bool):
    # Stage 2: acc += A_tile @ XW_block, f32 accumulator, bias+ReLU on finalize.
    k = pl.program_id(1)

    @pl.when(k == 0)
    def _():
        acc_ref[...] = jnp.zeros_like(acc_ref)

    acc_ref[...] += jnp.dot(a_ref[...], xw_ref[...],
                            preferred_element_type=jnp.float32)

    @pl.when(k == pl.num_programs(1) - 1)
    def _():
        y = acc_ref[...] + b_ref[...]
        if apply_relu:
            y = jnp.maximum(y, 0.0)
        o_ref[...] = y.astype(o_ref.dtype)


def _gcn_layer_tiled(A_p, X, W, b, *, N, apply_relu, tile, matmul_dtype, out_dtype):
    N_p = A_p.shape[0]
    F_in, F_out = W.shape
    F_in_p = _round_up(F_in, _LANE)
    F_out_p = _round_up(F_out, _LANE)

    X_p = _pad_to(X, (N_p, F_in_p)).astype(matmul_dtype)
    W_p = _pad_to(W, (F_in_p, F_out_p)).astype(matmul_dtype)
    b_p = _pad_to(b, (1, F_out_p)).astype(jnp.float32)

    # ---- Stage 1: XW = X @ W (once per layer; W resident, rows tiled) -----
    xw = pl.pallas_call(
        _xw_kernel,
        out_shape=jax.ShapeDtypeStruct((N_p, F_out_p), matmul_dtype),
        grid=(N_p // tile,),
        in_specs=[
            pl.BlockSpec((tile, F_in_p), lambda i: (i, 0)),
            pl.BlockSpec((F_in_p, F_out_p), lambda i: (0, 0)),
        ],
        out_specs=pl.BlockSpec((tile, F_out_p), lambda i: (i, 0)),
        compiler_params=pltpu.CompilerParams(dimension_semantics=("parallel",)),
    )(X_p, W_p)

    # ---- Stage 2: aggregate, streaming (A tile, narrow XW block) ----------
    out_p = pl.pallas_call(
        functools.partial(_agg_kernel, apply_relu=apply_relu),
        out_shape=jax.ShapeDtypeStruct((N_p, F_out_p), out_dtype),
        grid=(N_p // tile, N_p // tile),
        in_specs=[
            pl.BlockSpec((tile, tile), lambda i, k: (i, k)),       # A tile (bf16)
            pl.BlockSpec((tile, F_out_p), lambda i, k: (k, 0)),    # XW block (narrow)
            pl.BlockSpec((1, F_out_p), lambda i, k: (0, 0)),       # bias (resident)
        ],
        out_specs=pl.BlockSpec((tile, F_out_p), lambda i, k: (i, 0)),
        scratch_shapes=[pltpu.VMEM((tile, F_out_p), jnp.float32)],
        compiler_params=pltpu.CompilerParams(
            dimension_semantics=("parallel", "arbitrary")),
    )(A_p, xw, b_p)
    return out_p[:N, :F_out]


def gcn_forward_tiled(params, X, A, *, tile=256, matmul_dtype=jnp.bfloat16):
    """Per-layer tiled path. `tile` is used for both row and col tiles (tm == tk),
    avoiding lcm-padding blow-up; 256 fills the 256x256 MXU on v6e/v7x."""
    N = X.shape[0]
    N_p = _round_up(N, tile)
    A_p = _pad_to(A, (N_p, N_p)).astype(matmul_dtype)   # padded + cast once, all layers
    H = X
    for idx, (W, b) in enumerate(params):
        last = idx == len(params) - 1
        H = _gcn_layer_tiled(A_p, H, W, b, N=N, apply_relu=not last,
                             tile=tile, matmul_dtype=matmul_dtype, out_dtype=X.dtype)
    return H


# ---------------------------------------------------------------------------
# Top-level dispatch: gate fused vs tiled on the device's VMEM capacity
# ---------------------------------------------------------------------------
def _fused_vmem_bytes(params, X, matmul_dtype):
    itemsize = jnp.dtype(matmul_dtype).itemsize
    N_pad = _round_up(X.shape[0], _SUBLANE)
    dims = [X.shape[1]] + [w.shape[1] for w, _ in params]
    dims_p = [_round_up(d, _LANE) for d in dims]
    total = N_pad * N_pad * itemsize                      # A
    total += N_pad * dims_p[0] * itemsize                 # X
    for l in range(len(params)):
        total += dims_p[l] * dims_p[l + 1] * itemsize + dims_p[l + 1] * 4
    total += N_pad * dims_p[-1] * 4                       # output
    total += 3 * N_pad * max(dims_p) * 4                  # in-flight f32 temporaries
    return total


def gcn_forward(params, X, A, *, matmul_dtype=jnp.bfloat16, tile=256):
    try:
        vmem_cap = pltpu.get_tpu_info().vmem_capacity_bytes   # 64 MiB on v7x, 128 on v5e/v6e
    except Exception:
        vmem_cap = 64 << 20
    if _fused_vmem_bytes(params, X, matmul_dtype) <= vmem_cap // 3:
        return gcn_forward_fused(params, X, A, matmul_dtype=matmul_dtype)
    return gcn_forward_tiled(params, X, A, tile=tile, matmul_dtype=matmul_dtype)


# ---------------------------------------------------------------------------
# Parameter init, pure-JAX reference, demo inputs
# ---------------------------------------------------------------------------
def init_gcn_params(key, input_dim, hid_dim, n_classes, n_layers):
    input_dims = [input_dim] + [hid_dim] * (n_layers - 1)
    output_dims = [hid_dim] * (n_layers - 1) + [n_classes]
    params = []
    for fi, fo in zip(input_dims, output_dims):
        key, kw, kb = jax.random.split(key, 3)
        bound = 1.0 / float(jnp.sqrt(jnp.float32(fi)))
        W = jax.random.uniform(kw, (fi, fo), jnp.float32, -bound, bound)
        b = jax.random.uniform(kb, (1, fo), jnp.float32, -bound, bound)
        params.append((W, b))
    return params


def gcn_forward_ref(params, X, A):
    for W, b in params[:-1]:
        X = jnp.maximum(A @ (X @ W) + b, 0.0)
    W, b = params[-1]
    return A @ (X @ W) + b


def make_normalized_adjacency(key, N, density=0.1):
    A_raw = (jax.random.uniform(key, (N, N)) < density).astype(jnp.float32)
    A_raw = jnp.maximum(A_raw, A_raw.T)
    A_raw = A_raw + jnp.eye(N, dtype=jnp.float32)
    deg = A_raw.sum(axis=1)
    d_inv_sqrt = 1.0 / jnp.sqrt(deg)
    return A_raw * d_inv_sqrt[:, None] * d_inv_sqrt[None, :]


if __name__ == "__main__":
    key = jax.random.PRNGKey(0)
    k_x, k_a, k_p, k_x2, k_a2, k_p2 = jax.random.split(key, 6)

    # --- small graph: fused multi-layer kernel -----------------------------
    N, input_dim, hid_dim, n_classes, n_layers = 64, 16, 32, 8, 2
    X = jax.random.normal(k_x, (N, input_dim), jnp.float32)
    A = make_normalized_adjacency(k_a, N)
    params = init_gcn_params(k_p, input_dim, hid_dim, n_classes, n_layers)
    ref = gcn_forward_ref(params, X, A)

    out_f32 = jax.block_until_ready(
        gcn_forward_fused(params, X, A, matmul_dtype=jnp.float32))
    assert out_f32.shape == (N, n_classes), out_f32.shape
    assert jnp.allclose(out_f32, ref, atol=1e-4, rtol=1e-4), "fused f32 mismatch"

    out_bf16 = jax.block_until_ready(gcn_forward(params, X, A))   # bf16 default, gated path
    assert out_bf16.shape == (N, n_classes), out_bf16.shape
    assert jnp.allclose(out_bf16, ref, atol=3e-2, rtol=3e-2), "fused bf16 mismatch"

    # --- larger graph, wider input: tiled/pipelined per-layer kernels ------
    N2, input_dim2 = 200, 200   # N2 deliberately not a multiple of the tile
    X2 = jax.random.normal(k_x2, (N2, input_dim2), jnp.float32)
    A2 = make_normalized_adjacency(k_a2, N2)
    params2 = init_gcn_params(k_p2, input_dim2, hid_dim, n_classes, n_layers)
    ref2 = gcn_forward_ref(params2, X2, A2)

    out2_f32 = jax.block_until_ready(
        gcn_forward_tiled(params2, X2, A2, tile=128, matmul_dtype=jnp.float32))
    assert out2_f32.shape == (N2, n_classes), out2_f32.shape
    assert jnp.allclose(out2_f32, ref2, atol=1e-4, rtol=1e-4), "tiled f32 mismatch"

    out2_bf16 = jax.block_until_ready(
        gcn_forward_tiled(params2, X2, A2, tile=128, matmul_dtype=jnp.bfloat16))
    assert out2_bf16.shape == (N2, n_classes), out2_bf16.shape
    assert jnp.allclose(out2_bf16, ref2, atol=3e-2, rtol=3e-2), "tiled bf16 mismatch"

    print("KERNEL_OK")
</pallas_src>

<mosaic_0001>
module attributes {stable_mosaic.version = 11 : i64} {
  func.func @_gcn_fused_kernel(%arg0: memref<64x64xf32, #tpu.memory_space<vmem>>, %arg1: memref<64x128xf32, #tpu.memory_space<vmem>>, %arg2: memref<128x128xf32, #tpu.memory_space<vmem>>, %arg3: memref<1x128xf32, #tpu.memory_space<vmem>>, %arg4: memref<128x128xf32, #tpu.memory_space<vmem>>, %arg5: memref<1x128xf32, #tpu.memory_space<vmem>>, %arg6: memref<64x128xf32, #tpu.memory_space<vmem>>) attributes {dimension_semantics = [], scalar_prefetch = 0 : i64, scratch_operands = 0 : i64, tpu.core_type = #tpu.core_type<tc>} {
    %c0 = arith.constant 0 : index
    %c0_0 = arith.constant 0 : index
    %0 = vector.load %arg0[%c0, %c0_0] : memref<64x64xf32, #tpu.memory_space<vmem>>, vector<64x64xf32>
    %c0_1 = arith.constant 0 : index
    %c0_2 = arith.constant 0 : index
    %1 = vector.load %arg1[%c0_1, %c0_2] : memref<64x128xf32, #tpu.memory_space<vmem>>, vector<64x128xf32>
    %c0_3 = arith.constant 0 : index
    %c0_4 = arith.constant 0 : index
    %2 = vector.load %arg2[%c0_3, %c0_4] : memref<128x128xf32, #tpu.memory_space<vmem>>, vector<128x128xf32>
    %c0_5 = arith.constant 0 : index
    %c0_6 = arith.constant 0 : index
    %3 = vector.load %arg3[%c0_5, %c0_6] : memref<1x128xf32, #tpu.memory_space<vmem>>, vector<1x128xf32>
    %cst = arith.constant dense<0.000000e+00> : vector<64x128xf32>
    %4 = tpu.matmul %1, %2, %cst {dimension_numbers = #tpu.dot_dimension_numbers<[1], [0], [0], [1], [0, 0, 1, 1], [], []>} : vector<64x128xf32>, vector<128x128xf32>, vector<64x128xf32> -> vector<64x128xf32>
    %cst_7 = arith.constant dense<0.000000e+00> : vector<64x128xf32>
    %5 = tpu.matmul %0, %4, %cst_7 {dimension_numbers = #tpu.dot_dimension_numbers<[1], [0], [0], [1], [0, 0, 1, 1], [], []>} : vector<64x64xf32>, vector<64x128xf32>, vector<64x128xf32> -> vector<64x128xf32>
    %6 = vector.broadcast %3 : vector<1x128xf32> to vector<64x128xf32>
    %7 = arith.addf %5, %6 : vector<64x128xf32>
    %cst_8 = arith.constant 0.000000e+00 : f32
    %8 = vector.broadcast %cst_8 : f32 to vector<64x128xf32>
    %9 = arith.maximumf %7, %8 : vector<64x128xf32>
    %c0_9 = arith.constant 0 : index
    %c0_10 = arith.constant 0 : index
    %10 = vector.load %arg4[%c0_9, %c0_10] : memref<128x128xf32, #tpu.memory_space<vmem>>, vector<128x128xf32>
    %c0_11 = arith.constant 0 : index
    %c0_12 = arith.constant 0 : index
    %11 = vector.load %arg5[%c0_11, %c0_12] : memref<1x128xf32, #tpu.memory_space<vmem>>, vector<1x128xf32>
    %cst_13 = arith.constant dense<0.000000e+00> : vector<64x128xf32>
    %12 = tpu.matmul %9, %10, %cst_13 {dimension_numbers = #tpu.dot_dimension_numbers<[1], [0], [0], [1], [0, 0, 1, 1], [], []>} : vector<64x128xf32>, vector<128x128xf32>, vector<64x128xf32> -> vector<64x128xf32>
    %cst_14 = arith.constant dense<0.000000e+00> : vector<64x128xf32>
    %13 = tpu.matmul %0, %12, %cst_14 {dimension_numbers = #tpu.dot_dimension_numbers<[1], [0], [0], [1], [0, 0, 1, 1], [], []>} : vector<64x64xf32>, vector<64x128xf32>, vector<64x128xf32> -> vector<64x128xf32>
    %14 = vector.broadcast %11 : vector<1x128xf32> to vector<64x128xf32>
    %15 = arith.addf %13, %14 : vector<64x128xf32>
    %c0_15 = arith.constant 0 : index
    %c0_16 = arith.constant 0 : index
    %16 = vector.load %arg6[%c0_15, %c0_16] : memref<64x128xf32, #tpu.memory_space<vmem>>, vector<64x128xf32>
    tpu.vector_store %arg6[%c0_15, %c0_16], %15 {strides = array<i32>} : memref<64x128xf32, #tpu.memory_space<vmem>>, vector<64x128xf32>,
    return
  }
}

</mosaic_0001>

<llo_original>
// kernel: tpu_custom_call.1
$region0: #{tpu_custom_call.1}
  #allocation0 [shape = 'u32[]', space=smem, size = 0x4, offset = 0x4, fixed_abs, tag = 'smem constant byte address 0x4 - core index']
  #allocation1 [shape = 'u32[144,128]{1,0:T(1,128)}', space=vmem, size = 0x12000, scoped, tag = 'internal scratch']
  %s0 = inlined_call_operand.hbm [shape: f32[64,64], index: 0, kind: input, shape index: {}]
  %s1 = inlined_call_operand.hbm [shape: f32[64,128], index: 1, kind: input, shape index: {}]
  %s2 = inlined_call_operand.hbm [shape: f32[128,128], index: 2, kind: input, shape index: {}]
  %s3 = inlined_call_operand.vmem [shape: f32[1,128], index: 3, kind: input, shape index: {}]
  %s4 = inlined_call_operand.hbm [shape: f32[128,128], index: 4, kind: input, shape index: {}]
  %s5 = inlined_call_operand.vmem [shape: f32[1,128], index: 5, kind: input, shape index: {}]
  %s6 = inlined_call_operand.hbm [shape: f32[64,128], index: 6, kind: output, shape index: {}]
  %s7 = sld [smem:[#allocation0]]
  $region50: #{tpu_custom_call.1} parent=0
    _
  %s9 = ssub.s32 1, %s7
  %s10 = scalar_select 0, %s9, %s7
  $region1: #{tpu_custom_call.1} parent=0
    #allocation2 [shape = 'u8[32768]{0}', space=vmem, size = 0x8000, scoped, tag = 'input window, operand 0, single buffered']
    #allocation3 [shape = 's32[1]{0}', space=sflag, size = 0x4, scoped, tag = 'scoped memory for tpu_custom_call.1']
    #allocation4 [shape = 's32[1]{0}', space=sflag, size = 0x4, scoped, tag = 'scoped memory for tpu_custom_call.1']
    #allocation5 [shape = 'u8[32768]{0}', space=vmem, size = 0x8000, scoped, tag = 'input window, operand 1, single buffered']
    #allocation6 [shape = 's32[1]{0}', space=sflag, size = 0x4, scoped, tag = 'scoped memory for tpu_custom_call.1']
    #allocation7 [shape = 'u8[65536]{0}', space=vmem, size = 0x10000, scoped, tag = 'input window, operand 2, single buffered']
    #allocation8 [shape = 'u8[65536]{0}', space=vmem, size = 0x10000, scoped, tag = 'input window, operand 4, single buffered']
    #allocation9 [shape = 's32[1]{0}', space=sflag, size = 0x4, scoped, tag = 'scoped memory for tpu_custom_call.1']
    #allocation10 [shape = 'u8[32768]{0}', space=vmem, size = 0x8000, scoped, tag = 'output window, operand 0, single buffered']
    %11 = vsyncpa [#allocation3], 0
    %12 = vsyncpa [#allocation6], 0
    %13 = vsyncpa [#allocation9], 0
    %14 = vsyncpa [#allocation4], 0
    // Predicated region
    $region2: #{tpu_custom_call.1} parent=1 // pred_check
      _
    $region3: #{tpu_custom_call.1} parent=1 // pred_check_branch
      %16 = sbr.rel (0) target = $region5
    $region4: #{tpu_custom_call.1} parent=1 // pred_region
      %s18 = ssub.s32 1024, 1024
      %19 = vsyncadd [#allocation3], %s18
      %s20 = sshll.u32 [#allocation2], 4
      %s21 = int_to_ptr.vmem [resolvable:$true] %s20
      %26 = dma.hbm_to_vmem [thread:$0]  %s0, 1024, %s21, [#allocation3], 128, 128, 8
    $region5: #{tpu_custom_call.1} parent=1 // pred_fallthru
      _
    // Predicated region
    $region6: #{tpu_custom_call.1} parent=1 // pred_check
      _
    $region7: #{tpu_custom_call.1} parent=1 // pred_check_branch
      %28 = sbr.rel (0) target = $region9
    $region8: #{tpu_custom_call.1} parent=1 // pred_region
      %s30 = ssub.s32 1024, 1024
      %31 = vsyncadd [#allocation6], %s30
      %s32 = sshll.u32 [#allocation5], 4
      %s33 = int_to_ptr.vmem [resolvable:$true] %s32
      %38 = dma.hbm_to_vmem [thread:$0]  %s1, 1024, %s33, [#allocation6], 128, 128, 8
    $region9: #{tpu_custom_call.1} parent=1 // pred_fallthru
      _
    // Predicated region
    $region10: #{tpu_custom_call.1} parent=1 // pred_check
      _
    $region11: #{tpu_custom_call.1} parent=1 // pred_check_branch
      %40 = sbr.rel (0) target = $region13
    $region12: #{tpu_custom_call.1} parent=1 // pred_region
      %s42 = ssub.s32 2048, 2048
      %43 = vsyncadd [#allocation6], %s42
      %s44 = sshll.u32 [#allocation7], 4
      %s45 = int_to_ptr.vmem [resolvable:$true] %s44
      %50 = dma.hbm_to_vmem [thread:$0]  %s2, 2048, %s45, [#allocation6], 128, 128, 8
    $region13: #{tpu_custom_call.1} parent=1 // pred_fallthru
      _
    // Predicated region
    $region14: #{tpu_custom_call.1} parent=1 // pred_check
      _
    $region15: #{tpu_custom_call.1} parent=1 // pred_check_branch
      %52 = sbr.rel (0) target = $region17
    $region16: #{tpu_custom_call.1} parent=1 // pred_region
      _
    $region17: #{tpu_custom_call.1} parent=1 // pred_fallthru
      _
    // Predicated region
    $region18: #{tpu_custom_call.1} parent=1 // pred_check
      _
    $region19: #{tpu_custom_call.1} parent=1 // pred_check_branch
      %54 = sbr.rel (0) target = $region21
    $region20: #{tpu_custom_call.1} parent=1 // pred_region
      %s56 = ssub.s32 2048, 2048
      %57 = vsyncadd [#allocation9], %s56
      %s58 = sshll.u32 [#allocation8], 4
      %s59 = int_to_ptr.vmem [resolvable:$true] %s58
      %64 = dma.hbm_to_vmem [thread:$0]  %s4, 2048, %s59, [#allocation9], 128, 128, 8
    $region21: #{tpu_custom_call.1} parent=1 // pred_fallthru
      _
    // Predicated region
    $region22: #{tpu_custom_call.1} parent=1 // pred_check
      _
    $region23: #{tpu_custom_call.1} parent=1 // pred_check_branch
      %66 = sbr.rel (0) target = $region25
    $region24: #{tpu_custom_call.1} parent=1 // pred_region
      _
    $region25: #{tpu_custom_call.1} parent=1 // pred_fallthru
      _
    // Predicated region
    $region26: #{tpu_custom_call.1} parent=1 // pred_check
      _
    $region27: #{tpu_custom_call.1} parent=1 // pred_check_branch
      %68 = sbr.rel (0) target = $region29
    $region28: #{tpu_custom_call.1} parent=1 // pred_region
      %69 = dma.done [#allocation3], 1024
    $region29: #{tpu_custom_call.1} parent=1 // pred_fallthru
      _
    // Predicated region
    $region30: #{tpu_custom_call.1} parent=1 // pred_check
      _
    $region31: #{tpu_custom_call.1} parent=1 // pred_check_branch
      %71 = sbr.rel (0) target = $region33
    $region32: #{tpu_custom_call.1} parent=1 // pred_region
      %72 = dma.done [#allocation6], 1024
    $region33: #{tpu_custom_call.1} parent=1 // pred_fallthru
      _
    // Predicated region
    $region34: #{tpu_custom_call.1} parent=1 // pred_check
      _
    $region35: #{tpu_custom_call.1} parent=1 // pred_check_branch
      %74 = sbr.rel (0) target = $region37
    $region36: #{tpu_custom_call.1} parent=1 // pred_region
      %75 = dma.done [#allocation6], 2048
    $region37: #{tpu_custom_call.1} parent=1 // pred_fallthru
      _
    // Predicated region
    $region38: #{tpu_custom_call.1} parent=1 // pred_check
      _
    $region39: #{tpu_custom_call.1} parent=1 // pred_check_branch
      %77 = sbr.rel (0) target = $region41
    $region40: #{tpu_custom_call.1} parent=1 // pred_region
      %78 = dma.done [#allocation9], 2048
    $region41: #{tpu_custom_call.1} parent=1 // pred_fallthru
      _
    %v79 = vld [vmem:[#allocation2] sm:$0xff]
    %v80 = vld [vmem:[#allocation2 + $0x8] sm:$0xff]
    %v81 = vld [vmem:[#allocation2 + $0x10] sm:$0xff]
    %v82 = vld [vmem:[#allocation2 + $0x18] sm:$0xff]
    %v83 = vld [vmem:[#allocation2 + $0x20] sm:$0xff]
    %v84 = vld [vmem:[#allocation2 + $0x28] sm:$0xff]
    %v85 = vld [vmem:[#allocation2 + $0x30] sm:$0xff]
    %v86 = vld [vmem:[#allocation2 + $0x38] sm:$0xff]
    %v87 = vld [vmem:[#allocation5] sm:$0xff]
    %v88 = vld [vmem:[#allocation5 + $0x8] sm:$0xff]
    %v89 = vld [vmem:[#allocation5 + $0x10] sm:$0xff]
    %v90 = vld [vmem:[#allocation5 + $0x18] sm:$0xff]
    %v91 = vld [vmem:[#allocation5 + $0x20] sm:$0xff]
    %v92 = vld [vmem:[#allocation5 + $0x28] sm:$0xff]
    %v93 = vld [vmem:[#allocation5 + $0x30] sm:$0xff]
    %v94 = vld [vmem:[#allocation5 + $0x38] sm:$0xff]
    %v95 = vld [vmem:[#allocation7] sm:$0xff]
    %v96 = vld [vmem:[#allocation7 + $0x8] sm:$0xff]
    %v97 = vld [vmem:[#allocation7 + $0x10] sm:$0xff]
    %v98 = vld [vmem:[#allocation7 + $0x18] sm:$0xff]
    %v99 = vld [vmem:[#allocation7 + $0x20] sm:$0xff]
    %v100 = vld [vmem:[#allocation7 + $0x28] sm:$0xff]
    %v101 = vld [vmem:[#allocation7 + $0x30] sm:$0xff]
    %v102 = vld [vmem:[#allocation7 + $0x38] sm:$0xff]
    %v103 = vld [vmem:[#allocation7 + $0x40] sm:$0xff]
    %v104 = vld [vmem:[#allocation7 + $0x48] sm:$0xff]
    %v105 = vld [vmem:[#allocation7 + $0x50] sm:$0xff]
    %v106 = vld [vmem:[#allocation7 + $0x58] sm:$0xff]
    %v107 = vld [vmem:[#allocation7 + $0x60] sm:$0xff]
    %v108 = vld [vmem:[#allocation7 + $0x68] sm:$0xff]
    %v109 = vld [vmem:[#allocation7 + $0x70] sm:$0xff]
    %v110 = vld [vmem:[#allocation7 + $0x78] sm:$0xff]
    %v111 = vld [vmem:[%s3] sm:$0x1]
    %112 = vmatprep.subr.mxu0 0.0
    %113 = vmatpush1.msra.mxu0 %v110
    %114 = vmatprep.subr.mxu0 0.0
    %115 = vmatpush1.msra.mxu0 %v109
    %116 = vmatprep.subr.mxu0 0.0
    %117 = vmatpush1.msra.mxu0 %v108
    %118 = vmatprep.subr.mxu0 0.0
    %119 = vmatpush1.msra.mxu0 %v107
    %120 = vmatprep.subr.mxu0 0.0
    %121 = vmatpush1.msra.mxu0 %v106
    %122 = vmatprep.subr.mxu0 0.0
    %123 = vmatpush1.msra.mxu0 %v105
    %124 = vmatprep.subr.mxu0 0.0
    %125 = vmatpush1.msra.mxu0 %v104
    %126 = vmatprep.subr.mxu0 0.0
    %127 = vmatpush1.msra.mxu0 %v103
    %128 = vmatprep.subr.mxu0 0.0
    %129 = vmatpush1.msra.mxu0 %v102
    %130 = vmatprep.subr.mxu0 0.0
    %131 = vmatpush1.msra.mxu0 %v101
    %132 = vmatprep.subr.mxu0 0.0
    %133 = vmatpush1.msra.mxu0 %v100
    %134 = vmatprep.subr.mxu0 0.0
    %135 = vmatpush1.msra.mxu0 %v99
    %136 = vmatprep.subr.mxu0 0.0
    %137 = vmatpush1.msra.mxu0 %v98
    %138 = vmatprep.subr.mxu0 0.0
    %139 = vmatpush1.msra.mxu0 %v97
    %140 = vmatprep.subr.mxu0 0.0
    %141 = vmatpush1.msra.mxu0 %v96
    %142 = vmatprep.subr.mxu0 0.0
    %143 = vmatpush1.msra.mxu0 %v95
    %144 = vmatprep.subr.mxu0 0.0
    %145 = vmatpush2.msra.mxu0 0.0
    %146 = vmatprep.subr.mxu0 0.0
    %147 = vmatpush2.msra.mxu0 0.0
    %148 = vmatprep.subr.mxu0 0.0
    %149 = vmatpush2.msra.mxu0 0.0
    %150 = vmatprep.subr.mxu0 0.0
    %151 = vmatpush2.msra.mxu0 0.0
    %152 = vmatprep.subr.mxu0 0.0
    %153 = vmatpush2.msra.mxu0 0.0
    %154 = vmatprep.subr.mxu0 0.0
    %155 = vmatpush2.msra.mxu0 0.0
    %156 = vmatprep.subr.mxu0 0.0
    %157 = vmatpush2.msra.mxu0 0.0
    %158 = vmatprep.subr.mxu0 0.0
    %159 = vmatpush2.msra.mxu0 0.0
    %160 = vmatprep.subr.mxu0 0.0
    %161 = vmatpush2.msra.mxu0 0.0
    %162 = vmatprep.subr.mxu0 0.0
    %163 = vmatpush2.msra.mxu0 0.0
    %164 = vmatprep.subr.mxu0 0.0
    %165 = vmatpush2.msra.mxu0 0.0
    %166 = vmatprep.subr.mxu0 0.0
    %167 = vmatpush2.msra.mxu0 0.0
    %168 = vmatprep.subr.mxu0 0.0
    %169 = vmatpush2.msra.mxu0 0.0
    %170 = vmatprep.subr.mxu0 0.0
    %171 = vmatpush2.msra.mxu0 0.0
    %172 = vmatprep.subr.mxu0 0.0
    %173 = vmatpush2.msra.mxu0 0.0
    %174 = vmatprep.subr.mxu0 0.0
    %175 = vmatpush2.msra.mxu0 0.0
    %176 = vmatprep.mubr.f32.mxu0 0.0
    %177 = vmatmul.mubr.f32.gmra.mxu0 %v87
    %v178 = vpop.f32.mrf.mxu0
    %v179 = vadd.f32 0.0, %v178
    %v180 = vpop.f32.mrf.mxu0
    %181 = vmatprep.mubr.f32.mxu0 0.0
    %182 = vmatmul.mubr.f32.gmra.mxu0 %v88
    %v183 = vpop.f32.mrf.mxu0
    %v184 = vadd.f32 0.0, %v183
    %v185 = vpop.f32.mrf.mxu0
    %186 = vmatprep.mubr.f32.mxu0 0.0
    %187 = vmatmul.mubr.f32.gmra.mxu0 %v89
    %v188 = vpop.f32.mrf.mxu0
    %v189 = vadd.f32 0.0, %v188
    %v190 = vpop.f32.mrf.mxu0
    %191 = vmatprep.mubr.f32.mxu0 0.0
    %192 = vmatmul.mubr.f32.gmra.mxu0 %v90
    %v193 = vpop.f32.mrf.mxu0
    %v194 = vadd.f32 0.0, %v193
    %v195 = vpop.f32.mrf.mxu0
    %196 = vmatprep.mubr.f32.mxu0 0.0
    %197 = vmatmul.mubr.f32.gmra.mxu0 %v91
    %v198 = vpop.f32.mrf.mxu0
    %v199 = vadd.f32 0.0, %v198
    %v200 = vpop.f32.mrf.mxu0
    %201 = vmatprep.mubr.f32.mxu0 0.0
    %202 = vmatmul.mubr.f32.gmra.mxu0 %v92
    %v203 = vpop.f32.mrf.mxu0
    %v204 = vadd.f32 0.0, %v203
    %v205 = vpop.f32.mrf.mxu0
    %206 = vmatprep.mubr.f32.mxu0 0.0
    %207 = vmatmul.mubr.f32.gmra.mxu0 %v93
    %v208 = vpop.f32.mrf.mxu0
    %v209 = vadd.f32 0.0, %v208
    %v210 = vpop.f32.mrf.mxu0
    %211 = vmatprep.mubr.f32.mxu0 0.0
    %212 = vmatmul.mubr.f32.gmra.mxu0 %v94
    %v213 = vpop.f32.mrf.mxu0
    %v214 = vadd.f32 0.0, %v213
    %v215 = vpop.f32.mrf.mxu0
    %216 = vdwg.mxu0
    %v218 = vlaneseq
    %v219 = vshrl.u32 %v218, 7
    %v220 = vsub.s32 0, %v219
    %v221 = vrot.slane %v111, %v220
    %vm223 = vcmask 523264
    %v225 = vsel %vm223, %v79, 0
    %v228 = vsel %vm223, %v80, 0
    %v231 = vsel %vm223, %v81, 0
    %v234 = vsel %vm223, %v82, 0
    %v237 = vsel %vm223, %v83, 0
    %v240 = vsel %vm223, %v84, 0
    %v243 = vsel %vm223, %v85, 0
    %v246 = vsel %vm223, %v86, 0
    %248 = vmatprep.subr.mxu0 0.0
    %249 = vmatpush1.msra.mxu0 0.0
    %250 = vmatprep.subr.mxu0 0.0
    %251 = vmatpush1.msra.mxu0 0.0
    %252 = vmatprep.subr.mxu0 0.0
    %253 = vmatpush1.msra.mxu0 0.0
    %254 = vmatprep.subr.mxu0 0.0
    %255 = vmatpush1.msra.mxu0 0.0
    %256 = vmatprep.subr.mxu0 0.0
    %257 = vmatpush1.msra.mxu0 0.0
    %258 = vmatprep.subr.mxu0 0.0
    %259 = vmatpush1.msra.mxu0 0.0
    %260 = vmatprep.subr.mxu0 0.0
    %261 = vmatpush1.msra.mxu0 0.0
    %262 = vmatprep.subr.mxu0 0.0
    %263 = vmatpush1.msra.mxu0 0.0
    %264 = vmatprep.subr.mxu0 0.0
    %265 = vmatpush1.msra.mxu0 %v214
    %266 = vmatprep.subr.mxu0 0.0
    %267 = vmatpush1.msra.mxu0 %v209
    %268 = vmatprep.subr.mxu0 0.0
    %269 = vmatpush1.msra.mxu0 %v204
    %270 = vmatprep.subr.mxu0 0.0
    %271 = vmatpush1.msra.mxu0 %v199
    %272 = vmatprep.subr.mxu0 0.0
    %273 = vmatpush1.msra.mxu0 %v194
    %274 = vmatprep.subr.mxu0 0.0
    %275 = vmatpush1.msra.mxu0 %v189
    %276 = vmatprep.subr.mxu0 0.0
    %277 = vmatpush1.msra.mxu0 %v184
    %278 = vmatprep.subr.mxu0 0.0
    %279 = vmatpush1.msra.mxu0 %v179
    %280 = vmatprep.subr.mxu0 0.0
    %281 = vmatpush2.msra.mxu0 0.0
    %282 = vmatprep.subr.mxu0 0.0
    %283 = vmatpush2.msra.mxu0 0.0
    %284 = vmatprep.subr.mxu0 0.0
    %285 = vmatpush2.msra.mxu0 0.0
    %286 = vmatprep.subr.mxu0 0.0
    %287 = vmatpush2.msra.mxu0 0.0
    %288 = vmatprep.subr.mxu0 0.0
    %289 = vmatpush2.msra.mxu0 0.0
    %290 = vmatprep.subr.mxu0 0.0
    %291 = vmatpush2.msra.mxu0 0.0
    %292 = vmatprep.subr.mxu0 0.0
    %293 = vmatpush2.msra.mxu0 0.0
    %294 = vmatprep.subr.mxu0 0.0
    %295 = vmatpush2.msra.mxu0 0.0
    %296 = vmatprep.subr.mxu0 0.0
    %297 = vmatpush2.msra.mxu0 0.0
    %298 = vmatprep.subr.mxu0 0.0
    %299 = vmatpush2.msra.mxu0 0.0
    %300 = vmatprep.subr.mxu0 0.0
    %301 = vmatpush2.msra.mxu0 0.0
    %302 = vmatprep.subr.mxu0 0.0
    %303 = vmatpush2.msra.mxu0 0.0
    %304 = vmatprep.subr.mxu0 0.0
    %305 = vmatpush2.msra.mxu0 0.0
    %306 = vmatprep.subr.mxu0 0.0
    %307 = vmatpush2.msra.mxu0 0.0
    %308 = vmatprep.subr.mxu0 0.0
    %309 = vmatpush2.msra.mxu0 0.0
    %310 = vmatprep.subr.mxu0 0.0
    %311 = vmatpush2.msra.mxu0 0.0
    %312 = vmatprep.mubr.f32.mxu0 0.0
    %313 = vmatmul.mubr.f32.gmra.mxu0 %v225
    %v314 = vpop.f32.mrf.mxu0
    %v315 = vadd.f32 %v221, %v314
    %v316 = vpop.f32.mrf.mxu0
    %317 = vmatprep.mubr.f32.mxu0 0.0
    %318 = vmatmul.mubr.f32.gmra.mxu0 %v228
    %v319 = vpop.f32.mrf.mxu0
    %v320 = vadd.f32 %v221, %v319
    %v321 = vpop.f32.mrf.mxu0
    %322 = vmatprep.mubr.f32.mxu0 0.0
    %323 = vmatmul.mubr.f32.gmra.mxu0 %v231
    %v324 = vpop.f32.mrf.mxu0
    %v325 = vadd.f32 %v221, %v324
    %v326 = vpop.f32.mrf.mxu0
    %327 = vmatprep.mubr.f32.mxu0 0.0
    %328 = vmatmul.mubr.f32.gmra.mxu0 %v234
    %v329 = vpop.f32.mrf.mxu0
    %v330 = vadd.f32 %v221, %v329
    %v331 = vpop.f32.mrf.mxu0
    %332 = vmatprep.mubr.f32.mxu0 0.0
    %333 = vmatmul.mubr.f32.gmra.mxu0 %v237
    %v334 = vpop.f32.mrf.mxu0
    %v335 = vadd.f32 %v221, %v334
    %v336 = vpop.f32.mrf.mxu0
    %337 = vmatprep.mubr.f32.mxu0 0.0
    %338 = vmatmul.mubr.f32.gmra.mxu0 %v240
    %v339 = vpop.f32.mrf.mxu0
    %v340 = vadd.f32 %v221, %v339
    %v341 = vpop.f32.mrf.mxu0
    %342 = vmatprep.mubr.f32.mxu0 0.0
    %343 = vmatmul.mubr.f32.gmra.mxu0 %v243
    %v344 = vpop.f32.mrf.mxu0
    %v345 = vadd.f32 %v221, %v344
    %v346 = vpop.f32.mrf.mxu0
    %347 = vmatprep.mubr.f32.mxu0 0.0
    %348 = vmatmul.mubr.f32.gmra.mxu0 %v246
    %v349 = vpop.f32.mrf.mxu0
    %v350 = vadd.f32 %v221, %v349
    %v351 = vpop.f32.mrf.mxu0
    %352 = vdwg.mxu0
    %v353 = vmax.f32 %v315, 0.0
    %v354 = vmax.f32 %v320, 0.0
    %v355 = vmax.f32 %v325, 0.0
    %v356 = vmax.f32 %v330, 0.0
    %v357 = vmax.f32 %v335, 0.0
    %v358 = vmax.f32 %v340, 0.0
    %v359 = vmax.f32 %v345, 0.0
    %v360 = vmax.f32 %v350, 0.0
    %v361 = vld [vmem:[#allocation8] sm:$0xff]
    %v362 = vld [vmem:[#allocation8 + $0x8] sm:$0xff]
    %v363 = vld [vmem:[#allocation8 + $0x10] sm:$0xff]
    %v364 = vld [vmem:[#allocation8 + $0x18] sm:$0xff]
    %v365 = vld [vmem:[#allocation8 + $0x20] sm:$0xff]
    %v366 = vld [vmem:[#allocation8 + $0x28] sm:$0xff]
    %v367 = vld [vmem:[#allocation8 + $0x30] sm:$0xff]
    %v368 = vld [vmem:[#allocation8 + $0x38] sm:$0xff]
    %v369 = vld [vmem:[#allocation8 + $0x40] sm:$0xff]
    %v370 = vld [vmem:[#allocation8 + $0x48] sm:$0xff]
    %v371 = vld [vmem:[#allocation8 + $0x50] sm:$0xff]
    %v372 = vld [vmem:[#allocation8 + $0x58] sm:$0xff]
    %v373 = vld [vmem:[#allocation8 + $0x60] sm:$0xff]
    %v374 = vld [vmem:[#allocation8 + $0x68] sm:$0xff]
    %v375 = vld [vmem:[#allocation8 + $0x70] sm:$0xff]
    %v376 = vld [vmem:[#allocation8 + $0x78] sm:$0xff]
    %v377 = vld [vmem:[%s5] sm:$0x1]
    %378 = vmatprep.subr.mxu0 0.0
    %379 = vmatpush1.msra.mxu0 %v376
    %380 = vmatprep.subr.mxu0 0.0
    %381 = vmatpush1.msra.mxu0 %v375
    %382 = vmatprep.subr.mxu0 0.0
    %383 = vmatpush1.msra.mxu0 %v374
    %384 = vmatprep.subr.mxu0 0.0
    %385 = vmatpush1.msra.mxu0 %v373
    %386 = vmatprep.subr.mxu0 0.0
    %387 = vmatpush1.msra.mxu0 %v372
    %388 = vmatprep.subr.mxu0 0.0
    %389 = vmatpush1.msra.mxu0 %v371
    %390 = vmatprep.subr.mxu0 0.0
    %391 = vmatpush1.msra.mxu0 %v370
    %392 = vmatprep.subr.mxu0 0.0
    %393 = vmatpush1.msra.mxu0 %v369
    %394 = vmatprep.subr.mxu0 0.0
    %395 = vmatpush1.msra.mxu0 %v368
    %396 = vmatprep.subr.mxu0 0.0
    %397 = vmatpush1.msra.mxu0 %v367
    %398 = vmatprep.subr.mxu0 0.0
    %399 = vmatpush1.msra.mxu0 %v366
    %400 = vmatprep.subr.mxu0 0.0
    %401 = vmatpush1.msra.mxu0 %v365
    %402 = vmatprep.subr.mxu0 0.0
    %403 = vmatpush1.msra.mxu0 %v364
    %404 = vmatprep.subr.mxu0 0.0
    %405 = vmatpush1.msra.mxu0 %v363
    %406 = vmatprep.subr.mxu0 0.0
    %407 = vmatpush1.msra.mxu0 %v362
    %408 = vmatprep.subr.mxu0 0.0
    %409 = vmatpush1.msra.mxu0 %v361
    %410 = vmatprep.subr.mxu0 0.0
    %411 = vmatpush2.msra.mxu0 0.0
    %412 = vmatprep.subr.mxu0 0.0
    %413 = vmatpush2.msra.mxu0 0.0
    %414 = vmatprep.subr.mxu0 0.0
    %415 = vmatpush2.msra.mxu0 0.0
    %416 = vmatprep.subr.mxu0 0.0
    %417 = vmatpush2.msra.mxu0 0.0
    %418 = vmatprep.subr.mxu0 0.0
    %419 = vmatpush2.msra.mxu0 0.0
    %420 = vmatprep.subr.mxu0 0.0
    %421 = vmatpush2.msra.mxu0 0.0
    %422 = vmatprep.subr.mxu0 0.0
    %423 = vmatpush2.msra.mxu0 0.0
    %424 = vmatprep.subr.mxu0 0.0
    %425 = vmatpush2.msra.mxu0 0.0
    %426 = vmatprep.subr.mxu0 0.0
    %427 = vmatpush2.msra.mxu0 0.0
    %428 = vmatprep.subr.mxu0 0.0
    %429 = vmatpush2.msra.mxu0 0.0
    %430 = vmatprep.subr.mxu0 0.0
    %431 = vmatpush2.msra.mxu0 0.0
    %432 = vmatprep.subr.mxu0 0.0
    %433 = vmatpush2.msra.mxu0 0.0
    %434 = vmatprep.subr.mxu0 0.0
    %435 = vmatpush2.msra.mxu0 0.0
    %436 = vmatprep.subr.mxu0 0.0
    %437 = vmatpush2.msra.mxu0 0.0
    %438 = vmatprep.subr.mxu0 0.0
    %439 = vmatpush2.msra.mxu0 0.0
    %440 = vmatprep.subr.mxu0 0.0
    %441 = vmatpush2.msra.mxu0 0.0
    %442 = vmatprep.mubr.f32.mxu0 0.0
    %443 = vmatmul.mubr.f32.gmra.mxu0 %v353
    %v444 = vpop.f32.mrf.mxu0
    %v445 = vadd.f32 0.0, %v444
    %v446 = vpop.f32.mrf.mxu0
    %447 = vmatprep.mubr.f32.mxu0 0.0
    %448 = vmatmul.mubr.f32.gmra.mxu0 %v354
    %v449 = vpop.f32.mrf.mxu0
    %v450 = vadd.f32 0.0, %v449
    %v451 = vpop.f32.mrf.mxu0
    %452 = vmatprep.mubr.f32.mxu0 0.0
    %453 = vmatmul.mubr.f32.gmra.mxu0 %v355
    %v454 = vpop.f32.mrf.mxu0
    %v455 = vadd.f32 0.0, %v454
    %v456 = vpop.f32.mrf.mxu0
    %457 = vmatprep.mubr.f32.mxu0 0.0
    %458 = vmatmul.mubr.f32.gmra.mxu0 %v356
    %v459 = vpop.f32.mrf.mxu0
    %v460 = vadd.f32 0.0, %v459
    %v461 = vpop.f32.mrf.mxu0
    %462 = vmatprep.mubr.f32.mxu0 0.0
    %463 = vmatmul.mubr.f32.gmra.mxu0 %v357
    %v464 = vpop.f32.mrf.mxu0
    %v465 = vadd.f32 0.0, %v464
    %v466 = vpop.f32.mrf.mxu0
    %467 = vmatprep.mubr.f32.mxu0 0.0
    %468 = vmatmul.mubr.f32.gmra.mxu0 %v358
    %v469 = vpop.f32.mrf.mxu0
    %v470 = vadd.f32 0.0, %v469
    %v471 = vpop.f32.mrf.mxu0
    %472 = vmatprep.mubr.f32.mxu0 0.0
    %473 = vmatmul.mubr.f32.gmra.mxu0 %v359
    %v474 = vpop.f32.mrf.mxu0
    %v475 = vadd.f32 0.0, %v474
    %v476 = vpop.f32.mrf.mxu0
    %477 = vmatprep.mubr.f32.mxu0 0.0
    %478 = vmatmul.mubr.f32.gmra.mxu0 %v360
    %v479 = vpop.f32.mrf.mxu0
    %v480 = vadd.f32 0.0, %v479
    %v481 = vpop.f32.mrf.mxu0
    %482 = vdwg.mxu0
    %v484 = vlaneseq
    %v485 = vshrl.u32 %v484, 7
    %v486 = vsub.s32 0, %v485
    %v487 = vrot.slane %v377, %v486
    %489 = vmatprep.subr.mxu0 0.0
    %490 = vmatpush1.msra.mxu0 0.0
    %491 = vmatprep.subr.mxu0 0.0
    %492 = vmatpush1.msra.mxu0 0.0
    %493 = vmatprep.subr.mxu0 0.0
    %494 = vmatpush1.msra.mxu0 0.0
    %495 = vmatprep.subr.mxu0 0.0
    %496 = vmatpush1.msra.mxu0 0.0
    %497 = vmatprep.subr.mxu0 0.0
    %498 = vmatpush1.msra.mxu0 0.0
    %499 = vmatprep.subr.mxu0 0.0
    %500 = vmatpush1.msra.mxu0 0.0
    %501 = vmatprep.subr.mxu0 0.0
    %502 = vmatpush1.msra.mxu0 0.0
    %503 = vmatprep.subr.mxu0 0.0
    %504 = vmatpush1.msra.mxu0 0.0
    %505 = vmatprep.subr.mxu0 0.0
    %506 = vmatpush1.msra.mxu0 %v480
    %507 = vmatprep.subr.mxu0 0.0
    %508 = vmatpush1.msra.mxu0 %v475
    %509 = vmatprep.subr.mxu0 0.0
    %510 = vmatpush1.msra.mxu0 %v470
    %511 = vmatprep.subr.mxu0 0.0
    %512 = vmatpush1.msra.mxu0 %v465
    %513 = vmatprep.subr.mxu0 0.0
    %514 = vmatpush1.msra.mxu0 %v460
    %515 = vmatprep.subr.mxu0 0.0
    %516 = vmatpush1.msra.mxu0 %v455
    %517 = vmatprep.subr.mxu0 0.0
    %518 = vmatpush1.msra.mxu0 %v450
    %519 = vmatprep.subr.mxu0 0.0
    %520 = vmatpush1.msra.mxu0 %v445
    %521 = vmatprep.subr.mxu0 0.0
    %522 = vmatpush2.msra.mxu0 0.0
    %523 = vmatprep.subr.mxu0 0.0
    %524 = vmatpush2.msra.mxu0 0.0
    %525 = vmatprep.subr.mxu0 0.0
    %526 = vmatpush2.msra.mxu0 0.0
    %527 = vmatprep.subr.mxu0 0.0
    %528 = vmatpush2.msra.mxu0 0.0
    %529 = vmatprep.subr.mxu0 0.0
    %530 = vmatpush2.msra.mxu0 0.0
    %531 = vmatprep.subr.mxu0 0.0
    %532 = vmatpush2.msra.mxu0 0.0
    %533 = vmatprep.subr.mxu0 0.0
    %534 = vmatpush2.msra.mxu0 0.0
    %535 = vmatprep.subr.mxu0 0.0
    %536 = vmatpush2.msra.mxu0 0.0
    %537 = vmatprep.subr.mxu0 0.0
    %538 = vmatpush2.msra.mxu0 0.0
    %539 = vmatprep.subr.mxu0 0.0
    %540 = vmatpush2.msra.mxu0 0.0
    %541 = vmatprep.subr.mxu0 0.0
    %542 = vmatpush2.msra.mxu0 0.0
    %543 = vmatprep.subr.mxu0 0.0
    %544 = vmatpush2.msra.mxu0 0.0
    %545 = vmatprep.subr.mxu0 0.0
    %546 = vmatpush2.msra.mxu0 0.0
    %547 = vmatprep.subr.mxu0 0.0
    %548 = vmatpush2.msra.mxu0 0.0
    %549 = vmatprep.subr.mxu0 0.0
    %550 = vmatpush2.msra.mxu0 0.0
    %551 = vmatprep.subr.mxu0 0.0
    %552 = vmatpush2.msra.mxu0 0.0
    %553 = vmatprep.mubr.f32.mxu0 0.0
    %554 = vmatmul.mubr.f32.gmra.mxu0 %v225
    %v555 = vpop.f32.mrf.mxu0
    %v556 = vadd.f32 %v487, %v555
    %v557 = vpop.f32.mrf.mxu0
    %558 = vmatprep.mubr.f32.mxu0 0.0
    %559 = vmatmul.mubr.f32.gmra.mxu0 %v228
    %v560 = vpop.f32.mrf.mxu0
    %v561 = vadd.f32 %v487, %v560
    %v562 = vpop.f32.mrf.mxu0
    %563 = vmatprep.mubr.f32.mxu0 0.0
    %564 = vmatmul.mubr.f32.gmra.mxu0 %v231
    %v565 = vpop.f32.mrf.mxu0
    %v566 = vadd.f32 %v487, %v565
    %v567 = vpop.f32.mrf.mxu0
    %568 = vmatprep.mubr.f32.mxu0 0.0
    %569 = vmatmul.mubr.f32.gmra.mxu0 %v234
    %v570 = vpop.f32.mrf.mxu0
    %v571 = vadd.f32 %v487, %v570
    %v572 = vpop.f32.mrf.mxu0
    %573 = vmatprep.mubr.f32.mxu0 0.0
    %574 = vmatmul.mubr.f32.gmra.mxu0 %v237
    %v575 = vpop.f32.mrf.mxu0
    %v576 = vadd.f32 %v487, %v575
    %v577 = vpop.f32.mrf.mxu0
    %578 = vmatprep.mubr.f32.mxu0 0.0
    %579 = vmatmul.mubr.f32.gmra.mxu0 %v240
    %v580 = vpop.f32.mrf.mxu0
    %v581 = vadd.f32 %v487, %v580
    %v582 = vpop.f32.mrf.mxu0
    %583 = vmatprep.mubr.f32.mxu0 0.0
    %584 = vmatmul.mubr.f32.gmra.mxu0 %v243
    %v585 = vpop.f32.mrf.mxu0
    %v586 = vadd.f32 %v487, %v585
    %v587 = vpop.f32.mrf.mxu0
    %588 = vmatprep.mubr.f32.mxu0 0.0
    %589 = vmatmul.mubr.f32.gmra.mxu0 %v246
    %v590 = vpop.f32.mrf.mxu0
    %v591 = vadd.f32 %v487, %v590
    %v592 = vpop.f32.mrf.mxu0
    %593 = vdwg.mxu0
    %594 = vst [vmem:[#allocation10] sm:$0xff] %v556
    %595 = vst [vmem:[#allocation10 + $0x8] sm:$0xff] %v561
    %596 = vst [vmem:[#allocation10 + $0x10] sm:$0xff] %v566
    %597 = vst [vmem:[#allocation10 + $0x18] sm:$0xff] %v571
    %598 = vst [vmem:[#allocation10 + $0x20] sm:$0xff] %v576
    %599 = vst [vmem:[#allocation10 + $0x28] sm:$0xff] %v581
    %600 = vst [vmem:[#allocation10 + $0x30] sm:$0xff] %v586
    %601 = vst [vmem:[#allocation10 + $0x38] sm:$0xff] %v591
    // Predicated region
    $region42: #{tpu_custom_call.1} parent=1 // pred_check
      _
    $region43: #{tpu_custom_call.1} parent=1 // pred_check_branch
      %603 = sbr.rel (0) target = $region45
    $region44: #{tpu_custom_call.1} parent=1 // pred_region
      %s605 = ssub.s32 1024, 1024
      %606 = vsyncadd [#allocation4], %s605
      %s607 = sshll.u32 [#allocation10], 4
      %s608 = int_to_ptr.vmem [resolvable:$true] %s607
      %613 = dma.vmem_to_hbm [thread:$0]  %s608, 1024, %s6, [#allocation4], 128, 128, 8
    $region45: #{tpu_custom_call.1} parent=1 // pred_fallthru
      _
    // Predicated region
    $region46: #{tpu_custom_call.1} parent=1 // pred_check
      _
    $region47: #{tpu_custom_call.1} parent=1 // pred_check_branch
      %615 = sbr.rel (0) target = $region49
    $region48: #{tpu_custom_call.1} parent=1 // pred_region
      %616 = dma.done [#allocation4], 1024
    $region49: #{tpu_custom_call.1} parent=1 // pred_fallthru
      _
    %617 = vsyncpa [#allocation3], 1
    %618 = vsyncpa [#allocation6], 1
    %619 = vsyncpa [#allocation9], 1
    %620 = vsyncpa [#allocation4], 1

</llo_original>
